<compile_context>
chip_gen: v7x
topology: tpu7x:2x2x1
jax: 0.10.0
libtpu: 0.0.40
codegen_flags: <defaults>
</compile_context>

<pallas_src>
import functools

import jax
import jax.numpy as jnp
import numpy as np
from jax import lax
from jax.experimental import pallas as pl
from jax.experimental.pallas import tpu as pltpu


def _round_up(x: int, m: int) -> int:
    return (x + m - 1) // m * m


def _bahdanau_kernel(
    # inputs
    q_ref, k_ref, v_ref, wq_ref, wk_ref, bias_ref, ws_ref, bs_ref,
    # outputs
    ctx_ref, attn_ref,
    # scratch
    qp_scr, m_scr, l_scr, acc_scr,
    *, block_s: int, s_actual: int, needs_mask: bool,
):
    s_idx = pl.program_id(1)
    n_s = pl.num_programs(1)

    # ---- per-batch init (first S tile): project the single query row ----
    @pl.when(s_idx == 0)
    def _init():
        qp_scr[...] = jnp.dot(q_ref[...], wq_ref[...],
                              preferred_element_type=jnp.float32)      # (1, H)
        m_scr[...] = jnp.full(m_scr.shape, -jnp.inf, jnp.float32)
        l_scr[...] = jnp.zeros(l_scr.shape, jnp.float32)
        acc_scr[...] = jnp.zeros(acc_scr.shape, jnp.float32)

    # ---- key projection for this S tile: (ts, H) @ (H, H) on the MXU ----
    kp = jnp.dot(k_ref[...], wk_ref[...], preferred_element_type=jnp.float32)

    # ---- additive attention energies (f32, tanh on the EUP) ----
    t = jnp.tanh(kp + qp_scr[...] + bias_ref[...])                      # (ts, H)

    # score = t @ w_s^T, contracted on the last dims -> (1, ts); no transpose.
    score = lax.dot_general(ws_ref[...], t, (((1,), (1,)), ((), ())),
                            preferred_element_type=jnp.float32)         # (1, ts)
    score = score + bs_ref[...]                                         # scalar bias

    if needs_mask:
        pos = s_idx * block_s + lax.broadcasted_iota(jnp.int32, score.shape, 1)
        score = jnp.where(pos < s_actual, score, -jnp.inf)

    # Stash the raw score tile in the (resident) attention output block;
    # it is normalized once at the last S step.
    attn_ref[s_idx] = score

    # ---- online softmax update (f32 running max / sum) ----
    m_prev = m_scr[...]                                                 # (1, 1)
    m_new = jnp.maximum(m_prev, jnp.max(score, axis=-1, keepdims=True))
    alpha = jnp.exp(m_prev - m_new)
    p = jnp.exp(score - m_new)                                          # (1, ts)
    l_scr[...] = alpha * l_scr[...] + jnp.sum(p, axis=-1, keepdims=True)
    acc_scr[...] = alpha * acc_scr[...] + jnp.dot(
        p.astype(v_ref.dtype), v_ref[...], preferred_element_type=jnp.float32)
    m_scr[...] = m_new

    # ---- finalize: single normalization at the last S tile ----
    @pl.when(s_idx == n_s - 1)
    def _finalize():
        inv_l = pl.reciprocal(l_scr[...], approx=True)                  # EUP
        ctx_ref[...] = (acc_scr[...] * inv_l).astype(ctx_ref.dtype)
        m3 = m_scr[...].reshape(1, 1, 1)
        attn_ref[...] = (jnp.exp(attn_ref[...] - m3)
                         * inv_l.reshape(1, 1, 1)).astype(attn_ref.dtype)


def bahdanau_attention(query, key, value, params, *, block_s=None,
                       vmem_limit_bytes=None):
    """Additive (Bahdanau) attention.

    query: (B, 1, H) decoder state; key/value: (B, S, H) encoder features.
    Returns (context (B, 1, H), attn (B, S)) matching the PyTorch module.
    """
    B, q_len, H = query.shape
    if q_len != 1:
        # TODO(synk): general q_len broadcasting (the torch module only works for
        # q_len == 1 or q_len == S); this kernel implements the canonical
        # single-step decoder query (q_len == 1).
        raise NotImplementedError("kernel implements the q_len == 1 decoder step")
    _, S, _ = key.shape
    assert key.shape == (B, S, H) and value.shape == (B, S, H)

    # ---- choose the S tile: >=128 and 128-lane aligned ----
    if block_s is None:
        block_s = min(512, _round_up(S, 128))
    block_s = max(128, _round_up(block_s, 128))
    block_s = min(block_s, _round_up(S, 128))
    s_pad = _round_up(S, block_s)
    n_s = s_pad // block_s
    needs_mask = s_pad != S
    if needs_mask:
        pad = ((0, 0), (0, s_pad - S), (0, 0))
        key = jnp.pad(key, pad)
        value = jnp.pad(value, pad)

    compute_dtype = query.dtype
    # torch nn.Linear stores W as (out, in); pre-transpose in the wrapper so the
    # kernel does plain row-major x @ W with no in-kernel transposes.
    wq_t = jnp.asarray(params["query_proj"]).T.astype(compute_dtype)    # (H, H)
    wk_t = jnp.asarray(params["key_proj"]).T.astype(compute_dtype)      # (H, H)
    bias = jnp.asarray(params["bias"], jnp.float32).reshape(1, H)
    ws = jnp.asarray(params["score_proj_w"], jnp.float32).reshape(1, H)
    bs = jnp.asarray(params["score_proj_b"], jnp.float32).reshape(1, 1)

    kernel = functools.partial(_bahdanau_kernel, block_s=block_s,
                               s_actual=S, needs_mask=needs_mask)

    grid_spec = pltpu.PrefetchScalarGridSpec(
        num_scalar_prefetch=0,
        grid=(B, n_s),                                    # S reduction axis last
        in_specs=[
            pl.BlockSpec((None, 1, H), lambda b, s: (b, 0, 0)),         # query
            pl.BlockSpec((None, block_s, H), lambda b, s: (b, s, 0)),   # key
            pl.BlockSpec((None, block_s, H), lambda b, s: (b, s, 0)),   # value
            pl.BlockSpec((H, H), lambda b, s: (0, 0)),                  # Wq^T
            pl.BlockSpec((H, H), lambda b, s: (0, 0)),                  # Wk^T
            pl.BlockSpec((1, H), lambda b, s: (0, 0)),                  # bias
            pl.BlockSpec((1, H), lambda b, s: (0, 0)),                  # score w
            pl.BlockSpec((1, 1), lambda b, s: (0, 0)),                  # score b
        ],
        out_specs=[
            pl.BlockSpec((None, 1, H), lambda b, s: (b, 0, 0)),               # context
            pl.BlockSpec((None, n_s, 1, block_s), lambda b, s: (b, 0, 0, 0)), # attn
        ],
        scratch_shapes=[
            pltpu.VMEM((1, H), jnp.float32),      # projected query
            pltpu.VMEM((1, 1), jnp.float32),      # running max
            pltpu.VMEM((1, 1), jnp.float32),      # running sum
            pltpu.VMEM((1, H), jnp.float32),      # context accumulator
        ],
    )

    cp_kwargs = dict(dimension_semantics=("parallel", "arbitrary"))
    if vmem_limit_bytes is not None:              # raise on v6e for large S tiles
        cp_kwargs["vmem_limit_bytes"] = vmem_limit_bytes
    compiler_params = pltpu.CompilerParams(**cp_kwargs)

    context, attn = pl.pallas_call(
        kernel,
        out_shape=(
            jax.ShapeDtypeStruct((B, 1, H), query.dtype),
            jax.ShapeDtypeStruct((B, n_s, 1, block_s), jnp.float32),
        ),
        grid_spec=grid_spec,
        compiler_params=compiler_params,
    )(query, key, value, wq_t, wk_t, bias, ws, bs)

    attn = attn.reshape(B, s_pad)[:, :S]
    return context, attn


def bahdanau_reference(query, key, value, params):
    """Plain-JAX reference matching the PyTorch module."""
    hi = jax.lax.Precision.HIGHEST
    qp = jnp.einsum("bqh,oh->bqo", query, params["query_proj"], precision=hi)
    kp = jnp.einsum("bsh,oh->bso", key, params["key_proj"], precision=hi)
    t = jnp.tanh(kp + qp + params["bias"])
    score = (jnp.einsum("bsh,oh->bso", t, params["score_proj_w"], precision=hi)
             + params["score_proj_b"]).squeeze(-1)                     # (B, S)
    attn = jax.nn.softmax(score, axis=-1)
    context = jnp.einsum("bs,bsh->bh", attn, value, precision=hi)[:, None, :]
    return context, attn


if __name__ == "__main__":
    B, S, H = 2, 256, 128
    root = jax.random.PRNGKey(0)
    kq, kk, kv, k1, k2, k3, k4, k5 = jax.random.split(root, 8)
    query = jax.random.normal(kq, (B, 1, H), jnp.float32)
    key = jax.random.normal(kk, (B, S, H), jnp.float32)
    value = jax.random.normal(kv, (B, S, H), jnp.float32)
    scale = 1.0 / float(np.sqrt(H))
    params = {
        "query_proj": jax.random.normal(k1, (H, H), jnp.float32) * scale,
        "key_proj": jax.random.normal(k2, (H, H), jnp.float32) * scale,
        "bias": jax.random.uniform(k3, (H,), jnp.float32, minval=-0.1, maxval=0.1),
        "score_proj_w": jax.random.normal(k4, (1, H), jnp.float32) * scale,
        "score_proj_b": jax.random.normal(k5, (1,), jnp.float32) * 0.1,
    }

    context, attn = bahdanau_attention(query, key, value, params, block_s=128)
    jax.block_until_ready((context, attn))
    assert context.shape == (B, 1, H) and attn.shape == (B, S)

    ctx_ref, attn_ref = bahdanau_reference(query, key, value, params)
    np.testing.assert_allclose(np.asarray(context), np.asarray(ctx_ref),
                               rtol=2e-2, atol=2e-3)
    np.testing.assert_allclose(np.asarray(attn), np.asarray(attn_ref),
                               rtol=2e-2, atol=2e-3)
    print("KERNEL_OK")
</pallas_src>

<mosaic_0001>
module attributes {stable_mosaic.version = 11 : i64} {
  func.func @_bahdanau_kernel(%arg0: i32, %arg1: i32, %arg2: memref<1x1x128xf32, #tpu.memory_space<vmem>>, %arg3: memref<1x128x128xf32, #tpu.memory_space<vmem>>, %arg4: memref<1x128x128xf32, #tpu.memory_space<vmem>>, %arg5: memref<128x128xf32, #tpu.memory_space<vmem>>, %arg6: memref<128x128xf32, #tpu.memory_space<vmem>>, %arg7: memref<1x128xf32, #tpu.memory_space<vmem>>, %arg8: memref<1x128xf32, #tpu.memory_space<vmem>>, %arg9: memref<1x1xf32, #tpu.memory_space<vmem>>, %arg10: memref<1x1x128xf32, #tpu.memory_space<vmem>>, %arg11: memref<1x2x1x128xf32, #tpu.memory_space<vmem>>, %arg12: memref<1x128xf32, #tpu.memory_space<vmem>>, %arg13: memref<1x1xf32, #tpu.memory_space<vmem>>, %arg14: memref<1x1xf32, #tpu.memory_space<vmem>>, %arg15: memref<1x128xf32, #tpu.memory_space<vmem>>) attributes {dimension_semantics = [#tpu.dimension_semantics<parallel>, #tpu.dimension_semantics<arbitrary>], iteration_bounds = array<i64: 2, 2>, scalar_prefetch = 0 : i64, scratch_operands = 4 : i64, tpu.core_type = #tpu.core_type<tc>, window_params = [{transform_indices = @transform_0, window_bounds = array<i64: 1, 1, 128>}, {transform_indices = @transform_1, window_bounds = array<i64: 1, 128, 128>}, {transform_indices = @transform_2, window_bounds = array<i64: 1, 128, 128>}, {pipeline_mode = #tpu.pipeline_mode<synchronous>, transform_indices = @transform_3, window_bounds = array<i64: 128, 128>}, {pipeline_mode = #tpu.pipeline_mode<synchronous>, transform_indices = @transform_4, window_bounds = array<i64: 128, 128>}, {pipeline_mode = #tpu.pipeline_mode<synchronous>, transform_indices = @transform_5, window_bounds = array<i64: 1, 128>}, {pipeline_mode = #tpu.pipeline_mode<synchronous>, transform_indices = @transform_6, window_bounds = array<i64: 1, 128>}, {pipeline_mode = #tpu.pipeline_mode<synchronous>, transform_indices = @transform_7, window_bounds = array<i64: 1, 1>}, {transform_indices = @transform_8, window_bounds = array<i64: 1, 1, 128>}, {transform_indices = @transform_9, window_bounds = array<i64: 1, 2, 1, 128>}]} {
    %c0_i32 = arith.constant 0 : i32
    %0 = arith.cmpi eq, %arg1, %c0_i32 : i32
    %1 = arith.extui %0 : i1 to i32
    %c0_i32_0 = arith.constant 0 : i32
    %2 = arith.cmpi ne, %1, %c0_i32_0 : i32
    scf.if %2 {
      %c0_36 = arith.constant 0 : index
      %c0_37 = arith.constant 0 : index
      %c0_38 = arith.constant 0 : index
      %50 = vector.load %arg2[%c0_36, %c0_37, %c0_38] : memref<1x1x128xf32, #tpu.memory_space<vmem>>, vector<1x1x128xf32>
      %51 = vector.shape_cast %50 : vector<1x1x128xf32> to vector<1x128xf32>
      %c0_39 = arith.constant 0 : index
      %c0_40 = arith.constant 0 : index
      %52 = vector.load %arg5[%c0_39, %c0_40] : memref<128x128xf32, #tpu.memory_space<vmem>>, vector<128x128xf32>
      %cst_41 = arith.constant dense<0.000000e+00> : vector<1x128xf32>
      %53 = tpu.matmul %51, %52, %cst_41 {dimension_numbers = #tpu.dot_dimension_numbers<[1], [0], [0], [1], [0, 0, 1, 1], [], []>} : vector<1x128xf32>, vector<128x128xf32>, vector<1x128xf32> -> vector<1x128xf32>
      %c0_42 = arith.constant 0 : index
      %c0_43 = arith.constant 0 : index
      %54 = vector.load %arg12[%c0_42, %c0_43] : memref<1x128xf32, #tpu.memory_space<vmem>>, vector<1x128xf32>
      tpu.vector_store %arg12[%c0_42, %c0_43], %53 {strides = array<i32>} : memref<1x128xf32, #tpu.memory_space<vmem>>, vector<1x128xf32>,
      %cst_44 = arith.constant 0xFF800000 : f32
      %55 = vector.broadcast %cst_44 : f32 to vector<1x1xf32>
      %c0_45 = arith.constant 0 : index
      %c0_46 = arith.constant 0 : index
      %56 = vector.load %arg13[%c0_45, %c0_46] : memref<1x1xf32, #tpu.memory_space<vmem>>, vector<1x1xf32>
      tpu.vector_store %arg13[%c0_45, %c0_46], %55 {strides = array<i32>} : memref<1x1xf32, #tpu.memory_space<vmem>>, vector<1x1xf32>,
      %cst_47 = arith.constant 0.000000e+00 : f32
      %57 = vector.broadcast %cst_47 : f32 to vector<1x1xf32>
      %c0_48 = arith.constant 0 : index
      %c0_49 = arith.constant 0 : index
      %58 = vector.load %arg14[%c0_48, %c0_49] : memref<1x1xf32, #tpu.memory_space<vmem>>, vector<1x1xf32>
      tpu.vector_store %arg14[%c0_48, %c0_49], %57 {strides = array<i32>} : memref<1x1xf32, #tpu.memory_space<vmem>>, vector<1x1xf32>,
      %cst_50 = arith.constant 0.000000e+00 : f32
      %59 = vector.broadcast %cst_50 : f32 to vector<1x128xf32>
      %c0_51 = arith.constant 0 : index
      %c0_52 = arith.constant 0 : index
      %60 = vector.load %arg15[%c0_51, %c0_52] : memref<1x128xf32, #tpu.memory_space<vmem>>, vector<1x128xf32>
      tpu.vector_store %arg15[%c0_51, %c0_52], %59 {strides = array<i32>} : memref<1x128xf32, #tpu.memory_space<vmem>>, vector<1x128xf32>,
    } else {
    }
    %c0 = arith.constant 0 : index
    %c0_1 = arith.constant 0 : index
    %c0_2 = arith.constant 0 : index
    %3 = vector.load %arg3[%c0, %c0_1, %c0_2] : memref<1x128x128xf32, #tpu.memory_space<vmem>>, vector<1x128x128xf32>
    %4 = vector.shape_cast %3 : vector<1x128x128xf32> to vector<128x128xf32>
    %c0_3 = arith.constant 0 : index
    %c0_4 = arith.constant 0 : index
    %5 = vector.load %arg6[%c0_3, %c0_4] : memref<128x128xf32, #tpu.memory_space<vmem>>, vector<128x128xf32>
    %cst = arith.constant dense<0.000000e+00> : vector<128x128xf32>
    %6 = tpu.matmul %4, %5, %cst {dimension_numbers = #tpu.dot_dimension_numbers<[1], [0], [0], [1], [0, 0, 1, 1], [], []>} : vector<128x128xf32>, vector<128x128xf32>, vector<128x128xf32> -> vector<128x128xf32>
    %c0_5 = arith.constant 0 : index
    %c0_6 = arith.constant 0 : index
    %7 = vector.load %arg12[%c0_5, %c0_6] : memref<1x128xf32, #tpu.memory_space<vmem>>, vector<1x128xf32>
    %8 = vector.broadcast %7 : vector<1x128xf32> to vector<128x128xf32>
    %9 = arith.addf %6, %8 : vector<128x128xf32>
    %c0_7 = arith.constant 0 : index
    %c0_8 = arith.constant 0 : index
    %10 = vector.load %arg7[%c0_7, %c0_8] : memref<1x128xf32, #tpu.memory_space<vmem>>, vector<1x128xf32>
    %11 = vector.broadcast %10 : vector<1x128xf32> to vector<128x128xf32>
    %12 = arith.addf %9, %11 : vector<128x128xf32>
    %13 = math.tanh %12 : vector<128x128xf32>
    %c0_9 = arith.constant 0 : index
    %c0_10 = arith.constant 0 : index
    %14 = vector.load %arg8[%c0_9, %c0_10] : memref<1x128xf32, #tpu.memory_space<vmem>>, vector<1x128xf32>
    %cst_11 = arith.constant dense<0.000000e+00> : vector<1x128xf32>
    %15 = tpu.matmul %14, %13, %cst_11 {dimension_numbers = #tpu.dot_dimension_numbers<[1], [1], [0], [0], [0, 0, 1, 0], [], []>} : vector<1x128xf32>, vector<128x128xf32>, vector<1x128xf32> -> vector<1x128xf32>
    %c0_12 = arith.constant 0 : index
    %c0_13 = arith.constant 0 : index
    %16 = vector.load %arg9[%c0_12, %c0_13] : memref<1x1xf32, #tpu.memory_space<vmem>>, vector<1x1xf32>
    %17 = vector.broadcast %16 : vector<1x1xf32> to vector<1x128xf32>
    %18 = arith.addf %15, %17 : vector<1x128xf32>
    %c0_14 = arith.constant 0 : index
    %19 = arith.index_cast %arg1 : i32 to index
    %c0_15 = arith.constant 0 : index
    %c0_16 = arith.constant 0 : index
    %20 = vector.load %arg11[%c0_14, %19, %c0_15, %c0_16] : memref<1x2x1x128xf32, #tpu.memory_space<vmem>>, vector<1x1x1x128xf32>
    %21 = vector.shape_cast %20 : vector<1x1x1x128xf32> to vector<1x128xf32>
    %22 = vector.shape_cast %18 : vector<1x128xf32> to vector<1x1x1x128xf32>
    tpu.vector_store %arg11[%c0_14, %19, %c0_15, %c0_16], %22 {strides = array<i32>} : memref<1x2x1x128xf32, #tpu.memory_space<vmem>>, vector<1x1x1x128xf32>,
    %c0_17 = arith.constant 0 : index
    %c0_18 = arith.constant 0 : index
    %23 = vector.load %arg13[%c0_17, %c0_18] : memref<1x1xf32, #tpu.memory_space<vmem>>, vector<1x1xf32>
    %cst_19 = arith.constant dense<0xFF800000> : vector<1xf32>
    %24 = vector.multi_reduction <maximumf>, %18, %cst_19 [1] : vector<1x128xf32> to vector<1xf32>
    %25 = vector.shape_cast %24 : vector<1xf32> to vector<1x1xf32>
    %26 = arith.maximumf %23, %25 : vector<1x1xf32>
    %27 = arith.subf %23, %26 : vector<1x1xf32>
    %28 = math.exp %27 : vector<1x1xf32>
    %29 = vector.broadcast %26 : vector<1x1xf32> to vector<1x128xf32>
    %30 = arith.subf %18, %29 : vector<1x128xf32>
    %31 = math.exp %30 : vector<1x128xf32>
    %c0_20 = arith.constant 0 : index
    %c0_21 = arith.constant 0 : index
    %32 = vector.load %arg14[%c0_20, %c0_21] : memref<1x1xf32, #tpu.memory_space<vmem>>, vector<1x1xf32>
    %33 = arith.mulf %28, %32 : vector<1x1xf32>
    %cst_22 = arith.constant dense<0.000000e+00> : vector<1xf32>
    %34 = vector.multi_reduction <add>, %31, %cst_22 [1] : vector<1x128xf32> to vector<1xf32>
    %35 = vector.shape_cast %34 : vector<1xf32> to vector<1x1xf32>
    %36 = arith.addf %33, %35 : vector<1x1xf32>
    %c0_23 = arith.constant 0 : index
    %c0_24 = arith.constant 0 : index
    %37 = vector.load %arg14[%c0_23, %c0_24] : memref<1x1xf32, #tpu.memory_space<vmem>>, vector<1x1xf32>
    tpu.vector_store %arg14[%c0_23, %c0_24], %36 {strides = array<i32>} : memref<1x1xf32, #tpu.memory_space<vmem>>, vector<1x1xf32>,
    %c0_25 = arith.constant 0 : index
    %c0_26 = arith.constant 0 : index
    %38 = vector.load %arg15[%c0_25, %c0_26] : memref<1x128xf32, #tpu.memory_space<vmem>>, vector<1x128xf32>
    %39 = vector.broadcast %28 : vector<1x1xf32> to vector<1x128xf32>
    %40 = arith.mulf %39, %38 : vector<1x128xf32>
    %c0_27 = arith.constant 0 : index
    %c0_28 = arith.constant 0 : index
    %c0_29 = arith.constant 0 : index
    %41 = vector.load %arg4[%c0_27, %c0_28, %c0_29] : memref<1x128x128xf32, #tpu.memory_space<vmem>>, vector<1x128x128xf32>
    %42 = vector.shape_cast %41 : vector<1x128x128xf32> to vector<128x128xf32>
    %cst_30 = arith.constant dense<0.000000e+00> : vector<1x128xf32>
    %43 = tpu.matmul %31, %42, %cst_30 {dimension_numbers = #tpu.dot_dimension_numbers<[1], [0], [0], [1], [0, 0, 1, 1], [], []>} : vector<1x128xf32>, vector<128x128xf32>, vector<1x128xf32> -> vector<1x128xf32>
    %44 = arith.addf %40, %43 : vector<1x128xf32>
    %c0_31 = arith.constant 0 : index
    %c0_32 = arith.constant 0 : index
    %45 = vector.load %arg15[%c0_31, %c0_32] : memref<1x128xf32, #tpu.memory_space<vmem>>, vector<1x128xf32>
    tpu.vector_store %arg15[%c0_31, %c0_32], %44 {strides = array<i32>} : memref<1x128xf32, #tpu.memory_space<vmem>>, vector<1x128xf32>,
    %c0_33 = arith.constant 0 : index
    %c0_34 = arith.constant 0 : index
    %46 = vector.load %arg13[%c0_33, %c0_34] : memref<1x1xf32, #tpu.memory_space<vmem>>, vector<1x1xf32>
    tpu.vector_store %arg13[%c0_33, %c0_34], %26 {strides = array<i32>} : memref<1x1xf32, #tpu.memory_space<vmem>>, vector<1x1xf32>,
    %c1_i32 = arith.constant 1 : i32
    %47 = arith.cmpi eq, %arg1, %c1_i32 : i32
    %48 = arith.extui %47 : i1 to i32
    %c0_i32_35 = arith.constant 0 : i32
    %49 = arith.cmpi ne, %48, %c0_i32_35 : i32
    scf.if %49 {
      %c0_36 = arith.constant 0 : index
      %c0_37 = arith.constant 0 : index
      %50 = vector.load %arg14[%c0_36, %c0_37] : memref<1x1xf32, #tpu.memory_space<vmem>>, vector<1x1xf32>
      %51 = tpu.reciprocal %50 {approx = true} : vector<1x1xf32> -> vector<1x1xf32>
      %c0_38 = arith.constant 0 : index
      %c0_39 = arith.constant 0 : index
      %52 = vector.load %arg15[%c0_38, %c0_39] : memref<1x128xf32, #tpu.memory_space<vmem>>, vector<1x128xf32>
      %53 = vector.broadcast %51 : vector<1x1xf32> to vector<1x128xf32>
      %54 = arith.mulf %52, %53 : vector<1x128xf32>
      %c0_40 = arith.constant 0 : index
      %c0_41 = arith.constant 0 : index
      %c0_42 = arith.constant 0 : index
      %55 = vector.load %arg10[%c0_40, %c0_41, %c0_42] : memref<1x1x128xf32, #tpu.memory_space<vmem>>, vector<1x1x128xf32>
      %56 = vector.shape_cast %55 : vector<1x1x128xf32> to vector<1x128xf32>
      %57 = vector.shape_cast %54 : vector<1x128xf32> to vector<1x1x128xf32>
      tpu.vector_store %arg10[%c0_40, %c0_41, %c0_42], %57 {strides = array<i32>} : memref<1x1x128xf32, #tpu.memory_space<vmem>>, vector<1x1x128xf32>,
      %c0_43 = arith.constant 0 : index
      %c0_44 = arith.constant 0 : index
      %58 = vector.load %arg13[%c0_43, %c0_44] : memref<1x1xf32, #tpu.memory_space<vmem>>, vector<1x1xf32>
      %59 = vector.shape_cast %58 : vector<1x1xf32> to vector<1x1x1xf32>
      %c0_45 = arith.constant 0 : index
      %c0_46 = arith.constant 0 : index
      %c0_47 = arith.constant 0 : index
      %c0_48 = arith.constant 0 : index
      %60 = vector.load %arg11[%c0_45, %c0_46, %c0_47, %c0_48] : memref<1x2x1x128xf32, #tpu.memory_space<vmem>>, vector<1x2x1x128xf32>
      %61 = vector.shape_cast %60 : vector<1x2x1x128xf32> to vector<2x1x128xf32>
      %62 = vector.broadcast %59 : vector<1x1x1xf32> to vector<2x1x128xf32>
      %63 = arith.subf %61, %62 : vector<2x1x128xf32>
      %64 = math.exp %63 : vector<2x1x128xf32>
      %65 = vector.shape_cast %51 : vector<1x1xf32> to vector<1x1x1xf32>
      %66 = vector.broadcast %65 : vector<1x1x1xf32> to vector<2x1x128xf32>
      %67 = arith.mulf %64, %66 : vector<2x1x128xf32>
      %c0_49 = arith.constant 0 : index
      %c0_50 = arith.constant 0 : index
      %c0_51 = arith.constant 0 : index
      %c0_52 = arith.constant 0 : index
      %68 = vector.load %arg11[%c0_49, %c0_50, %c0_51, %c0_52] : memref<1x2x1x128xf32, #tpu.memory_space<vmem>>, vector<1x2x1x128xf32>
      %69 = vector.shape_cast %68 : vector<1x2x1x128xf32> to vector<2x1x128xf32>
      %70 = vector.shape_cast %67 : vector<2x1x128xf32> to vector<1x2x1x128xf32>
      tpu.vector_store %arg11[%c0_49, %c0_50, %c0_51, %c0_52], %70 {strides = array<i32>} : memref<1x2x1x128xf32, #tpu.memory_space<vmem>>, vector<1x2x1x128xf32>,
    } else {
    }
    return
  }
  func.func @transform_0(%arg0: i32, %arg1: i32) -> (i32, i32, i32) {
    %c0_i32 = arith.constant 0 : i32
    %c0_i32_0 = arith.constant 0 : i32
    %c0_i32_1 = arith.constant 0 : i32
    return %arg0, %c0_i32, %c0_i32_0 : i32, i32, i32
  }
  func.func @transform_1(%arg0: i32, %arg1: i32) -> (i32, i32, i32) {
    %c0_i32 = arith.constant 0 : i32
    %c0_i32_0 = arith.constant 0 : i32
    return %arg0, %arg1, %c0_i32 : i32, i32, i32
  }
  func.func @transform_2(%arg0: i32, %arg1: i32) -> (i32, i32, i32) {
    %c0_i32 = arith.constant 0 : i32
    %c0_i32_0 = arith.constant 0 : i32
    return %arg0, %arg1, %c0_i32 : i32, i32, i32
  }
  func.func @transform_3(%arg0: i32, %arg1: i32) -> (i32, i32) {
    %c0_i32 = arith.constant 0 : i32
    %c0_i32_0 = arith.constant 0 : i32
    %c0_i32_1 = arith.constant 0 : i32
    return %c0_i32, %c0_i32_0 : i32, i32
  }
  func.func @transform_4(%arg0: i32, %arg1: i32) -> (i32, i32) {
    %c0_i32 = arith.constant 0 : i32
    %c0_i32_0 = arith.constant 0 : i32
    %c0_i32_1 = arith.constant 0 : i32
    return %c0_i32, %c0_i32_0 : i32, i32
  }
  func.func @transform_5(%arg0: i32, %arg1: i32) -> (i32, i32) {
    %c0_i32 = arith.constant 0 : i32
    %c0_i32_0 = arith.constant 0 : i32
    %c0_i32_1 = arith.constant 0 : i32
    return %c0_i32, %c0_i32_0 : i32, i32
  }
  func.func @transform_6(%arg0: i32, %arg1: i32) -> (i32, i32) {
    %c0_i32 = arith.constant 0 : i32
    %c0_i32_0 = arith.constant 0 : i32
    %c0_i32_1 = arith.constant 0 : i32
    return %c0_i32, %c0_i32_0 : i32, i32
  }
  func.func @transform_7(%arg0: i32, %arg1: i32) -> (i32, i32) {
    %c0_i32 = arith.constant 0 : i32
    %c0_i32_0 = arith.constant 0 : i32
    %c0_i32_1 = arith.constant 0 : i32
    return %c0_i32, %c0_i32_0 : i32, i32
  }
  func.func @transform_8(%arg0: i32, %arg1: i32) -> (i32, i32, i32) {
    %c0_i32 = arith.constant 0 : i32
    %c0_i32_0 = arith.constant 0 : i32
    %c0_i32_1 = arith.constant 0 : i32
    return %arg0, %c0_i32, %c0_i32_0 : i32, i32, i32
  }
  func.func @transform_9(%arg0: i32, %arg1: i32) -> (i32, i32, i32, i32) {
    %c0_i32 = arith.constant 0 : i32
    %c0_i32_0 = arith.constant 0 : i32
    %c0_i32_1 = arith.constant 0 : i32
    %c0_i32_2 = arith.constant 0 : i32
    return %arg0, %c0_i32, %c0_i32_0, %c0_i32_1 : i32, i32, i32, i32
  }
}

</mosaic_0001>

<llo_original>
// kernel: tpu_custom_call.1
$region0: #{tpu_custom_call.1}
  #allocation0 [shape = 'u32[]', space=smem, size = 0x4, offset = 0x4, fixed_abs, tag = 'smem constant byte address 0x4 - core index']
  #allocation1 [shape = 'u32[144,128]{1,0:T(1,128)}', space=vmem, size = 0x12000, scoped, tag = 'internal scratch']
  #allocation2 [shape = 'f32[1,128]{1,0:T(1,128)}', space=vmem, size = 0x200, scoped, tag = 'scratch operand']
  #allocation3 [shape = 'f32[1,1]{1,0:T(1,128)}', space=vmem, size = 0x200, scoped, tag = 'scratch operand']
  #allocation4 [shape = 'f32[1,1]{1,0:T(1,128)}', space=vmem, size = 0x200, scoped, tag = 'scratch operand']
  #allocation5 [shape = 'f32[1,128]{1,0:T(1,128)}', space=vmem, size = 0x200, scoped, tag = 'scratch operand']
  #allocation6 [shape = 'f32[1,1]{1,0:T(1,128)S(1)}', space=vmem, size = 0x200, scoped, tag = 'scoped memory for tpu_custom_call.1']
  %s0 = inlined_call_operand.vmem [shape: f32[2,1,128], index: 0, kind: input, shape index: {}]
  %s1 = inlined_call_operand.hbm [shape: f32[2,256,128], index: 1, kind: input, shape index: {}]
  %s2 = inlined_call_operand.hbm [shape: f32[2,256,128], index: 2, kind: input, shape index: {}]
  %s3 = inlined_call_operand.hbm [shape: f32[128,128], index: 3, kind: input, shape index: {}]
  %s4 = inlined_call_operand.hbm [shape: f32[128,128], index: 4, kind: input, shape index: {}]
  %s5 = inlined_call_operand.vmem [shape: f32[1,128], index: 5, kind: input, shape index: {}]
  %s6 = inlined_call_operand.vmem [shape: f32[1,128], index: 6, kind: input, shape index: {}]
  %s7 = inlined_call_operand.<no memory space> [shape: f32[1,1], index: 7, kind: input, shape index: {}]
  %s8 = inlined_call_operand.hbm [shape: f32[2,1,128], index: 8, kind: output, shape index: {0}]
  %s9 = inlined_call_operand.hbm [shape: f32[2,2,1,128], index: 9, kind: output, shape index: {1}]
  %10 = xla_tuple %s8, %s9
  %s11 = sld [smem:[#allocation0]]
  $region97: #{tpu_custom_call.1} parent=0
    _
  %s13 = ssub.s32 1, %s11
  %s14 = scalar_select 0, %s13, %s11
  %v15 = vstv %s7
  %16 = vst [vmem:[#allocation6] sm:$0x1] %v15
  $region1: #{tpu_custom_call.1} parent=0
    #allocation7 [shape = 'u8[131072]{0}', space=vmem, size = 0x20000, scoped, tag = 'input window, operand 1']
    #allocation8 [shape = 's32[2]{0}', space=sflag, size = 0x8, scoped, tag = 'scoped memory for tpu_custom_call.1']
    #allocation9 [shape = 's32[2]{0}', space=sflag, size = 0x8, scoped, tag = 'scoped memory for tpu_custom_call.1']
    #allocation10 [shape = 'u8[131072]{0}', space=vmem, size = 0x20000, scoped, tag = 'input window, operand 2']
    #allocation11 [shape = 's32[2]{0}', space=sflag, size = 0x8, scoped, tag = 'scoped memory for tpu_custom_call.1']
    #allocation12 [shape = 'u8[65536]{0}', space=vmem, size = 0x10000, scoped, tag = 'input window, operand 3, single buffered']
    #allocation13 [shape = 'u8[65536]{0}', space=vmem, size = 0x10000, scoped, tag = 'input window, operand 4, single buffered']
    #allocation14 [shape = 's32[1]{0}', space=sflag, size = 0x4, scoped, tag = 'scoped memory for tpu_custom_call.1']
    #allocation15 [shape = 'u8[1024]{0}', space=vmem, size = 0x400, scoped, tag = 'output window, operand 0']
    #allocation16 [shape = 'u8[2048]{0}', space=vmem, size = 0x800, scoped, tag = 'output window, operand 1']
    #allocation17 [shape = 's32[2]{0}', space=sflag, size = 0x8, scoped, tag = 'scoped memory for tpu_custom_call.1']
    %17 = vsyncpa [#allocation8], 0
    %s18 = scalar_lea.sflag [#allocation8], 1
    %19 = vsyncpa %s18, 0
    %20 = vsyncpa [#allocation11], 0
    %s21 = scalar_lea.sflag [#allocation11], 1
    %22 = vsyncpa %s21, 0
    %23 = vsyncpa [#allocation14], 0
    %24 = vsyncpa [#allocation9], 0
    %s25 = scalar_lea.sflag [#allocation9], 1
    %26 = vsyncpa %s25, 0
    %27 = vsyncpa [#allocation17], 0
    %s28 = scalar_lea.sflag [#allocation17], 1
    %29 = vsyncpa %s28, 0
    loop: start=0, step=1, limit=6
    $region2: #{tpu_custom_call.1} parent=1 // loop_pre_header
      _
    $region3: #{tpu_custom_call.1} parent=1 // loop_header
      %s31 = sphi 0, %s35
      %p32 = scmp.ge.s32.totalorder %s31, 6
      %s38 = sphi 0, %s50
      %s39 = sphi 0, %s46
      %s40 = sphi 0, %s38
      %s41 = sphi 0, %s39
      %s42 = sphi 0, %s40
      %s43 = sphi 0, %s41
      %s53 = sphi 0, %s55
      %s56 = sphi 0, %s53
      %s57 = sphi 0, %s56
      %s73 = sphi 0, %s57
      %s81 = sphi 0, %s83
      %s84 = sphi 0, %s81
      %s85 = sphi 0, %s84
      %s101 = sphi 0, %s85
      %s109 = sphi 0, %s111
      %s112 = sphi 0, %s109
      %s113 = sphi 0, %s112
      %s129 = sphi 0, %s113
      %s133 = sphi 0, %s133
      %s135 = sphi 0, %s133
      %s136 = sphi 0, %s135
      %s150 = sphi 0, %s136
      %s154 = sphi 0, %s154
      %s156 = sphi 0, %s154
      %s157 = sphi 0, %s156
      %s171 = sphi 0, %s157
      %s175 = sphi 0, %s175
      %s177 = sphi 0, %s175
      %s178 = sphi 0, %s177
      %s192 = sphi 0, %s178
      %s196 = sphi 0, %s196
      %s198 = sphi 0, %s196
      %s199 = sphi 0, %s198
      %s213 = sphi 0, %s199
      %s217 = sphi 0, %s217
      %s219 = sphi 0, %s217
      %s220 = sphi 0, %s219
      %s234 = sphi 0, %s220
      %s240 = sphi 0, %s242
      %s243 = sphi 0, %s240
      %s244 = sphi 0, %s243
      %s260 = sphi 0, %s244
      %s266 = sphi 0, %s268
      %s269 = sphi 0, %s266
      %s270 = sphi 0, %s269
      %s286 = sphi 0, %s270
    $region4: #{tpu_custom_call.1} parent=1 // loop_header_branch
      %34 = sbr.rel (%p32) target = $region8
    $region5: #{tpu_custom_call.1} parent=1 // loop_body
      %s36 = ssub.s32 %s31, 1
      %s37 = ssub.s32 %s31, 2
      %s44 = sadd.s32 1, %s39
      %p45 = scmp.ge.s32.totalorder %s44, 2
      %s46 = scalar_select %p45, 0, %s44
      %s47 = sadd.s32 1, %s38
      %s48 = scalar_select %p45, %s47, %s38
      %p49 = scmp.ge.s32.totalorder %s48, 2
      %s50 = scalar_select %p49, 0, %s48
      %s51 = ssub.s32 %s38, %s50
      %p52 = scmp.eq.s32.totalorder %s51, 0
      %s54 = sadd.s32 %s53, 1
      %s55 = scalar_select %p52, %s53, %s54
      %p58 = pneg %p52
      %p59 = scmp.eq.s32.totalorder %s31, 3
      %p60 = por %p58, %p59
      %p61 = scmp.ne.s32.totalorder %s53, %s56
      %p62 = scmp.eq.s32.totalorder %s31, 0
      %p63 = por %p61, %p62
      %p64 = scmp.ne.s32.totalorder %s53, %s56
      %p65 = scmp.eq.s32.totalorder %s36, 3
      %p66 = por %p64, %p65
      %p67 = scmp.ne.s32.totalorder %s56, %s57
      %p68 = scmp.eq.s32.totalorder %s36, 0
      %p69 = por %p67, %p68
      %p70 = scmp.ne.s32.totalorder %s56, %s57
      %p71 = scmp.eq.s32.totalorder %s37, 3
      %p72 = por %p70, %p71
      %p74 = scmp.ne.s32.totalorder %s57, %s73
      %p75 = scmp.eq.s32.totalorder %s37, 0
      %p76 = por %p74, %p75
      %s77 = ssub.s32 %s38, %s50
      %s78 = ssub.s32 %s39, %s46
      %s79 = sor.u32 %s77, %s78
      %p80 = scmp.eq.s32.totalorder %s79, 0
      %s82 = sadd.s32 %s81, 1
      %s83 = scalar_select %p80, %s81, %s82
      %p86 = pneg %p80
      %p87 = scmp.eq.s32.totalorder %s31, 3
      %p88 = por %p86, %p87
      %p89 = scmp.ne.s32.totalorder %s81, %s84
      %p90 = scmp.eq.s32.totalorder %s31, 0
      %p91 = por %p89, %p90
      %p92 = scmp.ne.s32.totalorder %s81, %s84
      %p93 = scmp.eq.s32.totalorder %s36, 3
      %p94 = por %p92, %p93
      %p95 = scmp.ne.s32.totalorder %s84, %s85
      %p96 = scmp.eq.s32.totalorder %s36, 0
      %p97 = por %p95, %p96
      %p98 = scmp.ne.s32.totalorder %s84, %s85
      %p99 = scmp.eq.s32.totalorder %s37, 3
      %p100 = por %p98, %p99
      %p102 = scmp.ne.s32.totalorder %s85, %s101
      %p103 = scmp.eq.s32.totalorder %s37, 0
      %p104 = por %p102, %p103
      %s105 = ssub.s32 %s38, %s50
      %s106 = ssub.s32 %s39, %s46
      %s107 = sor.u32 %s105, %s106
      %p108 = scmp.eq.s32.totalorder %s107, 0
      %s110 = sadd.s32 %s109, 1
      %s111 = scalar_select %p108, %s109, %s110
      %p114 = pneg %p108
      %p115 = scmp.eq.s32.totalorder %s31, 3
      %p116 = por %p114, %p115
      %p117 = scmp.ne.s32.totalorder %s109, %s112
      %p118 = scmp.eq.s32.totalorder %s31, 0
      %p119 = por %p117, %p118
      %p120 = scmp.ne.s32.totalorder %s109, %s112
      %p121 = scmp.eq.s32.totalorder %s36, 3
      %p122 = por %p120, %p121
      %p123 = scmp.ne.s32.totalorder %s112, %s113
      %p124 = scmp.eq.s32.totalorder %s36, 0
      %p125 = por %p123, %p124
      %p126 = scmp.ne.s32.totalorder %s112, %s113
      %p127 = scmp.eq.s32.totalorder %s37, 3
      %p128 = por %p126, %p127
      %p130 = scmp.ne.s32.totalorder %s113, %s129
      %p131 = scmp.eq.s32.totalorder %s37, 0
      %p132 = por %p130, %p131
      %s134 = sadd.s32 %s133, 1
      %p137 = scmp.eq.s32.totalorder %s31, 3
      %p138 = scmp.ne.s32.totalorder %s133, %s135
      %p139 = scmp.eq.s32.totalorder %s31, 0
      %p140 = por %p138, %p139
      %p141 = scmp.ne.s32.totalorder %s133, %s135
      %p142 = scmp.eq.s32.totalorder %s36, 3
      %p143 = por %p141, %p142
      %p144 = scmp.ne.s32.totalorder %s135, %s136
      %p145 = scmp.eq.s32.totalorder %s36, 0
      %p146 = por %p144, %p145
      %p147 = scmp.ne.s32.totalorder %s135, %s136
      %p148 = scmp.eq.s32.totalorder %s37, 3
      %p149 = por %p147, %p148
      %p151 = scmp.ne.s32.totalorder %s136, %s150
      %p152 = scmp.eq.s32.totalorder %s37, 0
      %p153 = por %p151, %p152
      %s155 = sadd.s32 %s154, 1
      %p158 = scmp.eq.s32.totalorder %s31, 3
      %p159 = scmp.ne.s32.totalorder %s154, %s156
      %p160 = scmp.eq.s32.totalorder %s31, 0
      %p161 = por %p159, %p160
      %p162 = scmp.ne.s32.totalorder %s154, %s156
      %p163 = scmp.eq.s32.totalorder %s36, 3
      %p164 = por %p162, %p163
      %p165 = scmp.ne.s32.totalorder %s156, %s157
      %p166 = scmp.eq.s32.totalorder %s36, 0
      %p167 = por %p165, %p166
      %p168 = scmp.ne.s32.totalorder %s156, %s157
      %p169 = scmp.eq.s32.totalorder %s37, 3
      %p170 = por %p168, %p169
      %p172 = scmp.ne.s32.totalorder %s157, %s171
      %p173 = scmp.eq.s32.totalorder %s37, 0
      %p174 = por %p172, %p173
      %s176 = sadd.s32 %s175, 1
      %p179 = scmp.eq.s32.totalorder %s31, 3
      %p180 = scmp.ne.s32.totalorder %s175, %s177
      %p181 = scmp.eq.s32.totalorder %s31, 0
      %p182 = por %p180, %p181
      %p183 = scmp.ne.s32.totalorder %s175, %s177
      %p184 = scmp.eq.s32.totalorder %s36, 3
      %p185 = por %p183, %p184
      %p186 = scmp.ne.s32.totalorder %s177, %s178
      %p187 = scmp.eq.s32.totalorder %s36, 0
      %p188 = por %p186, %p187
      %p189 = scmp.ne.s32.totalorder %s177, %s178
      %p190 = scmp.eq.s32.totalorder %s37, 3
      %p191 = por %p189, %p190
      %p193 = scmp.ne.s32.totalorder %s178, %s192
      %p194 = scmp.eq.s32.totalorder %s37, 0
      %p195 = por %p193, %p194
      %s197 = sadd.s32 %s196, 1
      %p200 = scmp.eq.s32.totalorder %s31, 3
      %p201 = scmp.ne.s32.totalorder %s196, %s198
      %p202 = scmp.eq.s32.totalorder %s31, 0
      %p203 = por %p201, %p202
      %p204 = scmp.ne.s32.totalorder %s196, %s198
      %p205 = scmp.eq.s32.totalorder %s36, 3
      %p206 = por %p204, %p205
      %p207 = scmp.ne.s32.totalorder %s198, %s199
      %p208 = scmp.eq.s32.totalorder %s36, 0
      %p209 = por %p207, %p208
      %p210 = scmp.ne.s32.totalorder %s198, %s199
      %p211 = scmp.eq.s32.totalorder %s37, 3
      %p212 = por %p210, %p211
      %p214 = scmp.ne.s32.totalorder %s199, %s213
      %p215 = scmp.eq.s32.totalorder %s37, 0
      %p216 = por %p214, %p215
      %s218 = sadd.s32 %s217, 1
      %p221 = scmp.eq.s32.totalorder %s31, 3
      %p222 = scmp.ne.s32.totalorder %s217, %s219
      %p223 = scmp.eq.s32.totalorder %s31, 0
      %p224 = por %p222, %p223
      %p225 = scmp.ne.s32.totalorder %s217, %s219
      %p226 = scmp.eq.s32.totalorder %s36, 3
      %p227 = por %p225, %p226
      %p228 = scmp.ne.s32.totalorder %s219, %s220
      %p229 = scmp.eq.s32.totalorder %s36, 0
      %p230 = por %p228, %p229
      %p231 = scmp.ne.s32.totalorder %s219, %s220
      %p232 = scmp.eq.s32.totalorder %s37, 3
      %p233 = por %p231, %p232
      %p235 = scmp.ne.s32.totalorder %s220, %s234
      %p236 = scmp.eq.s32.totalorder %s37, 0
      %p237 = por %p235, %p236
      %s238 = ssub.s32 %s38, %s50
      %p239 = scmp.eq.s32.totalorder %s238, 0
      %s241 = sadd.s32 %s240, 1
      %s242 = scalar_select %p239, %s240, %s241
      %p245 = pneg %p239
      %p246 = scmp.eq.s32.totalorder %s31, 3
      %p247 = por %p245, %p246
      %p248 = scmp.ne.s32.totalorder %s240, %s243
      %p249 = scmp.eq.s32.totalorder %s31, 0
      %p250 = por %p248, %p249
      %p251 = scmp.ne.s32.totalorder %s240, %s243
      %p252 = scmp.eq.s32.totalorder %s36, 3
      %p253 = por %p251, %p252
      %p254 = scmp.ne.s32.totalorder %s243, %s244
      %p255 = scmp.eq.s32.totalorder %s36, 0
      %p256 = por %p254, %p255
      %p257 = scmp.ne.s32.totalorder %s243, %s244
      %p258 = scmp.eq.s32.totalorder %s37, 3
      %p259 = por %p257, %p258
      %p261 = scmp.ne.s32.totalorder %s244, %s260
      %p262 = scmp.eq.s32.totalorder %s37, 0
      %p263 = por %p261, %p262
      %s264 = ssub.s32 %s38, %s50
      %p265 = scmp.eq.s32.totalorder %s264, 0
      %s267 = sadd.s32 %s266, 1
      %s268 = scalar_select %p265, %s266, %s267
      %p271 = pneg %p265
      %p272 = scmp.eq.s32.totalorder %s31, 3
      %p273 = por %p271, %p272
      %p274 = scmp.ne.s32.totalorder %s266, %s269
      %p275 = scmp.eq.s32.totalorder %s31, 0
      %p276 = por %p274, %p275
      %p277 = scmp.ne.s32.totalorder %s266, %s269
      %p278 = scmp.eq.s32.totalorder %s36, 3
      %p279 = por %p277, %p278
      %p280 = scmp.ne.s32.totalorder %s269, %s270
      %p281 = scmp.eq.s32.totalorder %s36, 0
      %p282 = por %p280, %p281
      %p283 = scmp.ne.s32.totalorder %s269, %s270
      %p284 = scmp.eq.s32.totalorder %s37, 3
      %p285 = por %p283, %p284
      %p287 = scmp.ne.s32.totalorder %s270, %s286
      %p288 = scmp.eq.s32.totalorder %s37, 0
      %p289 = por %p287, %p288
      %p290 = scmp.le.s32.totalorder 1, %s31
      %p291 = scmp.lt.s32.totalorder %s31, 5
      %p292 = pnand %p290, %p291
      %p293 = pneg %p292
      // Predicated region
      $region9: #{tpu_custom_call.1} parent=5 // pred_check
        _
      $region10: #{tpu_custom_call.1} parent=5 // pred_check_branch
        %295 = sbr.rel (%p292) target = $region12
      $region11: #{tpu_custom_call.1} parent=5 // pred_region
        %s296 = ssub.s32 %s31, 1
        // Predicated region
        $region13: #{tpu_custom_call.1} parent=11 // pred_check
          %p297 = pneg %p146
        $region14: #{tpu_custom_call.1} parent=11 // pred_check_branch
          %299 = sbr.rel (%p297) target = $region16
        $region15: #{tpu_custom_call.1} parent=11 // pred_region
          %s301 = ssub.s32 2048, 2048
          %302 = vsyncadd [#allocation11], %s301
          %s303 = sshll.u32 [#allocation12], 4
          %s304 = int_to_ptr.vmem [resolvable:$true] %s303
          %309 = dma.hbm_to_vmem [thread:$0]  %s3, 2048, %s304, [#allocation11], 128, 128, 8
        $region16: #{tpu_custom_call.1} parent=11 // pred_fallthru
          _
        // Predicated region
        $region17: #{tpu_custom_call.1} parent=11 // pred_check
          %p310 = pneg %p167
        $region18: #{tpu_custom_call.1} parent=11 // pred_check_branch
          %312 = sbr.rel (%p310) target = $region20
        $region19: #{tpu_custom_call.1} parent=11 // pred_region
          %s314 = ssub.s32 2048, 2048
          %315 = vsyncadd [#allocation14], %s314
          %s316 = sshll.u32 [#allocation13], 4
          %s317 = int_to_ptr.vmem [resolvable:$true] %s316
          %322 = dma.hbm_to_vmem [thread:$0]  %s4, 2048, %s317, [#allocation14], 128, 128, 8
        $region20: #{tpu_custom_call.1} parent=11 // pred_fallthru
          _
        // Predicated region
        $region21: #{tpu_custom_call.1} parent=11 // pred_check
          %p323 = pneg %p188
        $region22: #{tpu_custom_call.1} parent=11 // pred_check_branch
          %325 = sbr.rel (%p323) target = $region24
        $region23: #{tpu_custom_call.1} parent=11 // pred_region
          _
        $region24: #{tpu_custom_call.1} parent=11 // pred_fallthru
          _
        // Predicated region
        $region25: #{tpu_custom_call.1} parent=11 // pred_check
          %p326 = pneg %p209
        $region26: #{tpu_custom_call.1} parent=11 // pred_check_branch
          %328 = sbr.rel (%p326) target = $region28
        $region27: #{tpu_custom_call.1} parent=11 // pred_region
          _
        $region28: #{tpu_custom_call.1} parent=11 // pred_fallthru
          _
        // Predicated region
        $region29: #{tpu_custom_call.1} parent=11 // pred_check
          %p329 = pneg %p230
        $region30: #{tpu_custom_call.1} parent=11 // pred_check_branch
          %331 = sbr.rel (%p329) target = $region32
        $region31: #{tpu_custom_call.1} parent=11 // pred_region
          _
        $region32: #{tpu_custom_call.1} parent=11 // pred_fallthru
          _
      $region12: #{tpu_custom_call.1} parent=5 // pred_fallthru
        _
      %p332 = scmp.lt.s32.totalorder %s31, 4
      // Predicated region
      $region33: #{tpu_custom_call.1} parent=5 // pred_check
        %p333 = pneg %p332
      $region34: #{tpu_custom_call.1} parent=5 // pred_check_branch
        %335 = sbr.rel (%p333) target = $region36
      $region35: #{tpu_custom_call.1} parent=5 // pred_region
        // Predicated region
        $region37: #{tpu_custom_call.1} parent=35 // pred_check
          %p336 = pneg %p63
        $region38: #{tpu_custom_call.1} parent=35 // pred_check_branch
          %338 = sbr.rel (%p336) target = $region40
        $region39: #{tpu_custom_call.1} parent=35 // pred_region
          %p339 = scmp.lt.s32.totalorder %s38, 1
          %s340 = scalar_select %p339, %s38, 1
          %s341 = scalar_lea.vmem %s0, %s340
        $region40: #{tpu_custom_call.1} parent=35 // pred_fallthru
          _
        // Predicated region
        $region41: #{tpu_custom_call.1} parent=35 // pred_check
          %p342 = pneg %p91
        $region42: #{tpu_custom_call.1} parent=35 // pred_check_branch
          %344 = sbr.rel (%p342) target = $region44
        $region43: #{tpu_custom_call.1} parent=35 // pred_region
          %s345 = sand.u32 %s81, 1
          %s346 = scalar_lea.sflag [#allocation8], %s345
          %s347 = sand.u32 %s81, 1
          %s348 = smul.addr %s347, 128
          %s349 = scalar_lea.vmem [#allocation7], %s348
          %s350 = smul.u32 16, %s39
          %s352 = ssub.s32 2048, 2048
          %353 = vsyncadd %s346, %s352
          %s354 = smul.addr %s38, 32
          %s355 = sadd.s32 %s350, %s354
          %s356 = smul.addr %s355, 128
          %s357 = scalar_lea.hbm %s1, %s356
          %s358 = sshll.u32 %s349, 4
          %s359 = int_to_ptr.vmem [resolvable:$true] %s358
          %364 = dma.hbm_to_vmem [thread:$0]  %s357, 2048, %s359, %s346, 128, 128, 8
        $region44: #{tpu_custom_call.1} parent=35 // pred_fallthru
          _
        // Predicated region
        $region45: #{tpu_custom_call.1} parent=35 // pred_check
          %p365 = pneg %p119
        $region46: #{tpu_custom_call.1} parent=35 // pred_check_branch
          %367 = sbr.rel (%p365) target = $region48
        $region47: #{tpu_custom_call.1} parent=35 // pred_region
          %s368 = sand.u32 %s31, 1
          %s369 = scalar_lea.sflag [#allocation11], %s368
          %s370 = sand.u32 %s109, 1
          %s371 = smul.addr %s370, 128
          %s372 = scalar_lea.vmem [#allocation10], %s371
          %s373 = smul.u32 16, %s39
          %s375 = ssub.s32 2048, 2048
          %376 = vsyncadd %s369, %s375
          %s377 = smul.addr %s38, 32
          %s378 = sadd.s32 %s373, %s377
          %s379 = smul.addr %s378, 128
          %s380 = scalar_lea.hbm %s2, %s379
          %s381 = sshll.u32 %s372, 4
          %s382 = int_to_ptr.vmem [resolvable:$true] %s381
          %387 = dma.hbm_to_vmem [thread:$0]  %s380, 2048, %s382, %s369, 128, 128, 8
        $region48: #{tpu_custom_call.1} parent=35 // pred_fallthru
          _
      $region36: #{tpu_custom_call.1} parent=5 // pred_fallthru
        _
      %p388 = scmp.le.s32.totalorder 1, %s31
      %p389 = scmp.lt.s32.totalorder %s31, 5
      %p390 = pnand %p388, %p389
      %p391 = pneg %p390
      // Predicated region
      $region49: #{tpu_custom_call.1} parent=5 // pred_check
        _
      $region50: #{tpu_custom_call.1} parent=5 // pred_check_branch
        %393 = sbr.rel (%p390) target = $region52
      $region51: #{tpu_custom_call.1} parent=5 // pred_region
        %s394 = ssub.s32 %s31, 1
        %s395 = sand.u32 %s84, 1
        %s396 = scalar_lea.sflag [#allocation8], %s395
        %s397 = sand.u32 %s84, 1
        %s398 = smul.addr %s397, 128
        %s399 = scalar_lea.vmem [#allocation7], %s398
        // Predicated region
        $region53: #{tpu_custom_call.1} parent=51 // pred_check
          %p400 = pneg %p97
        $region54: #{tpu_custom_call.1} parent=51 // pred_check_branch
          %402 = sbr.rel (%p400) target = $region56
        $region55: #{tpu_custom_call.1} parent=51 // pred_region
          %403 = dma.done %s396, 2048
        $region56: #{tpu_custom_call.1} parent=51 // pred_fallthru
          _
        %s404 = sand.u32 %s36, 1
        %s405 = scalar_lea.sflag [#allocation11], %s404
        %s406 = sand.u32 %s112, 1
        %s407 = smul.addr %s406, 128
        %s408 = scalar_lea.vmem [#allocation10], %s407
        // Predicated region
        $region57: #{tpu_custom_call.1} parent=51 // pred_check
          %p409 = pneg %p125
        $region58: #{tpu_custom_call.1} parent=51 // pred_check_branch
          %411 = sbr.rel (%p409) target = $region60
        $region59: #{tpu_custom_call.1} parent=51 // pred_region
          %412 = dma.done %s405, 2048
        $region60: #{tpu_custom_call.1} parent=51 // pred_fallthru
          _
        // Predicated region
        $region61: #{tpu_custom_call.1} parent=51 // pred_check
          %p413 = pneg %p146
        $region62: #{tpu_custom_call.1} parent=51 // pred_check_branch
          %415 = sbr.rel (%p413) target = $region64
        $region63: #{tpu_custom_call.1} parent=51 // pred_region
          %416 = dma.done [#allocation11], 2048
        $region64: #{tpu_custom_call.1} parent=51 // pred_fallthru
          _
        // Predicated region
        $region65: #{tpu_custom_call.1} parent=51 // pred_check
          %p417 = pneg %p167
        $region66: #{tpu_custom_call.1} parent=51 // pred_check_branch
          %419 = sbr.rel (%p417) target = $region68
        $region67: #{tpu_custom_call.1} parent=51 // pred_region
          %420 = dma.done [#allocation14], 2048
        $region68: #{tpu_custom_call.1} parent=51 // pred_fallthru
          _
        %p421 = scmp.lt.s32.totalorder %s40, 1
        %s422 = scalar_select %p421, %s40, 1
        %s423 = scalar_lea.vmem %s0, %s422
        %p424 = pneg %p69
        %p425 = pneg %p66
        %s426 = sand.u32 %s84, 1
        %s427 = scalar_lea.sflag [#allocation8], %s426
        %s428 = sand.u32 %s84, 1
        %s429 = smul.addr %s428, 128
        %s430 = scalar_lea.vmem [#allocation7], %s429
        %p431 = pneg %p97
        %p432 = pneg %p94
        %s433 = sand.u32 %s36, 1
        %s434 = scalar_lea.sflag [#allocation11], %s433
        %s435 = sand.u32 %s112, 1
        %s436 = smul.addr %s435, 128
        %s437 = scalar_lea.vmem [#allocation10], %s436
        %p438 = pneg %p125
        %p439 = pneg %p122
        %p440 = pneg %p146
        %p441 = pneg %p143
        %p442 = pneg %p167
        %p443 = pneg %p164
        %p444 = pneg %p188
        %p445 = pneg %p185
        %p446 = pneg %p209
        %p447 = pneg %p206
        %p448 = pneg %p230
        %p449 = pneg %p227
        %p450 = pneg %p256
        %p451 = pneg %p253
        %s452 = sand.u32 %s243, 1
        %s453 = scalar_lea.sflag [#allocation9], %s452
        %s454 = sand.u32 %s243, 1
        %s455 = scalar_lea.vmem [#allocation15], %s454
        %p456 = pneg %p282
        %p457 = pneg %p279
        %s458 = sand.u32 %s269, 1
        %s459 = scalar_lea.sflag [#allocation17], %s458
        %s460 = sand.u32 %s269, 1
        %s461 = smul.addr %s460, 2
        %s462 = scalar_lea.vmem [#allocation16], %s461
        %p463 = scmp.lt.s32.totalorder %s40, 1
        %s464 = scalar_select %p463, %s40, 1
        %s465 = scalar_lea.vmem %s0, %s464
        %s466 = smul.u32 16, %s41
        %s467 = smul.u32 16, %s41
        %p468 = scmp.eq.s32.totalorder %s41, 0
        // Predicated region
        $region69: #{tpu_custom_call.1} parent=51 // pred_check
          %p469 = pneg %p468
        $region70: #{tpu_custom_call.1} parent=51 // pred_check_branch
          %471 = sbr.rel (%p469) target = $region72
        $region71: #{tpu_custom_call.1} parent=51 // pred_region
          %v472 = vld [vmem:[%s465] sm:$0x1]
          %v473 = vld [vmem:[#allocation12] sm:$0xff]
          %v474 = vld [vmem:[#allocation12 + $0x8] sm:$0xff]
          %v475 = vld [vmem:[#allocation12 + $0x10] sm:$0xff]
          %v476 = vld [vmem:[#allocation12 + $0x18] sm:$0xff]
          %v477 = vld [vmem:[#allocation12 + $0x20] sm:$0xff]
          %v478 = vld [vmem:[#allocation12 + $0x28] sm:$0xff]
          %v479 = vld [vmem:[#allocation12 + $0x30] sm:$0xff]
          %v480 = vld [vmem:[#allocation12 + $0x38] sm:$0xff]
          %v481 = vld [vmem:[#allocation12 + $0x40] sm:$0xff]
          %v482 = vld [vmem:[#allocation12 + $0x48] sm:$0xff]
          %v483 = vld [vmem:[#allocation12 + $0x50] sm:$0xff]
          %v484 = vld [vmem:[#allocation12 + $0x58] sm:$0xff]
          %v485 = vld [vmem:[#allocation12 + $0x60] sm:$0xff]
          %v486 = vld [vmem:[#allocation12 + $0x68] sm:$0xff]
          %v487 = vld [vmem:[#allocation12 + $0x70] sm:$0xff]
          %v488 = vld [vmem:[#allocation12 + $0x78] sm:$0xff]
          %489 = vmatprep.subr.mxu0 0.0
          %490 = vmatpush1.msra.mxu0 %v473
          %491 = vmatprep.subr.mxu0 0.0
          %492 = vmatpush1.msra.mxu0 %v474
          %493 = vmatprep.subr.mxu0 0.0
          %494 = vmatpush1.msra.mxu0 %v475
          %495 = vmatprep.subr.mxu0 0.0
          %496 = vmatpush1.msra.mxu0 %v476
          %497 = vmatprep.subr.mxu0 0.0
          %498 = vmatpush1.msra.mxu0 %v477
          %499 = vmatprep.subr.mxu0 0.0
          %500 = vmatpush1.msra.mxu0 %v478
          %501 = vmatprep.subr.mxu0 0.0
          %502 = vmatpush1.msra.mxu0 %v479
          %503 = vmatprep.subr.mxu0 0.0
          %504 = vmatpush1.msra.mxu0 %v480
          %505 = vmatprep.subr.mxu0 0.0
          %506 = vmatpush1.msra.mxu0 %v481
          %507 = vmatprep.subr.mxu0 0.0
          %508 = vmatpush1.msra.mxu0 %v482
          %509 = vmatprep.subr.mxu0 0.0
          %510 = vmatpush1.msra.mxu0 %v483
          %511 = vmatprep.subr.mxu0 0.0
          %512 = vmatpush1.msra.mxu0 %v484
          %513 = vmatprep.subr.mxu0 0.0
          %514 = vmatpush1.msra.mxu0 %v485
          %515 = vmatprep.subr.mxu0 0.0
          %516 = vmatpush1.msra.mxu0 %v486
          %517 = vmatprep.subr.mxu0 0.0
          %518 = vmatpush1.msra.mxu0 %v487
          %519 = vmatprep.subr.mxu0 0.0
          %520 = vmatpush1.msra.mxu0 %v488
          %521 = vmatprep.subr.mxu0 0.0
          %522 = vmatpush1.msra.mxu0 0.0
          %523 = vmatprep.subr.mxu0 0.0
          %524 = vmatpush1.msra.mxu0 0.0
          %525 = vmatprep.subr.mxu0 0.0
          %526 = vmatpush1.msra.mxu0 0.0
          %527 = vmatprep.subr.mxu0 0.0
          %528 = vmatpush1.msra.mxu0 0.0
          %529 = vmatprep.subr.mxu0 0.0
          %530 = vmatpush1.msra.mxu0 0.0
          %531 = vmatprep.subr.mxu0 0.0
          %532 = vmatpush1.msra.mxu0 0.0
          %533 = vmatprep.subr.mxu0 0.0
          %534 = vmatpush1.msra.mxu0 0.0
          %535 = vmatprep.subr.mxu0 0.0
          %536 = vmatpush1.msra.mxu0 0.0
          %537 = vmatprep.subr.mxu0 0.0
          %538 = vmatpush1.msra.mxu0 0.0
          %539 = vmatprep.subr.mxu0 0.0
          %540 = vmatpush1.msra.mxu0 0.0
          %541 = vmatprep.subr.mxu0 0.0
          %542 = vmatpush1.msra.mxu0 0.0
          %543 = vmatprep.subr.mxu0 0.0
          %544 = vmatpush1.msra.mxu0 0.0
          %545 = vmatprep.subr.mxu0 0.0
          %546 = vmatpush1.msra.mxu0 0.0
          %547 = vmatprep.subr.mxu0 0.0
          %548 = vmatpush1.msra.mxu0 0.0
          %549 = vmatprep.subr.mxu0 0.0
          %550 = vmatpush1.msra.mxu0 0.0
          %551 = vmatprep.subr.mxu0 0.0
          %552 = vmatpush1.msra.mxu0 0.0
          %553 = vmatprep.mubr.f32.mxu0 0.0
          %554 = vmatmul.mubr.f32.gmra.mrb[0].mxu0 %v472
          %v555 = vpop.f32.mrb[0].mxu0
          %v556 = vadd.f32 0.0, %v555
          %v557 = vpop.f32.mrb[0].mxu0
          %558 = vdwg.mxu0
          %559 = vst [vmem:[#allocation2] sm:$0x1] %v556
          %vm560 = vcmask 0
          %561 = vst.msk [vmem:[#allocation3] sm:$0x1] %vm560, -inf
          %562 = vst.msk [vmem:[#allocation4] sm:$0x1] %vm560, 0.0
          %563 = vst [vmem:[#allocation5] sm:$0x1] 0.0
        $region72: #{tpu_custom_call.1} parent=51 // pred_fallthru
          _
        %v564 = vld [vmem:[%s399] sm:$0xff]
        %v565 = vld [vmem:[%s399 + $0x8] sm:$0xff]
        %v566 = vld [vmem:[%s399 + $0x10] sm:$0xff]
        %v567 = vld [vmem:[%s399 + $0x18] sm:$0xff]
        %v568 = vld [vmem:[%s399 + $0x20] sm:$0xff]
        %v569 = vld [vmem:[%s399 + $0x28] sm:$0xff]
        %v570 = vld [vmem:[%s399 + $0x30] sm:$0xff]
        %v571 = vld [vmem:[%s399 + $0x38] sm:$0xff]
        %v572 = vld [vmem:[%s399 + $0x40] sm:$0xff]
        %v573 = vld [vmem:[%s399 + $0x48] sm:$0xff]
        %v574 = vld [vmem:[%s399 + $0x50] sm:$0xff]
        %v575 = vld [vmem:[%s399 + $0x58] sm:$0xff]
        %v576 = vld [vmem:[%s399 + $0x60] sm:$0xff]
        %v577 = vld [vmem:[%s399 + $0x68] sm:$0xff]
        %v578 = vld [vmem:[%s399 + $0x70] sm:$0xff]
        %v579 = vld [vmem:[%s399 + $0x78] sm:$0xff]
        %v580 = vld [vmem:[#allocation13] sm:$0xff]
        %v581 = vld [vmem:[#allocation13 + $0x8] sm:$0xff]
        %v582 = vld [vmem:[#allocation13 + $0x10] sm:$0xff]
        %v583 = vld [vmem:[#allocation13 + $0x18] sm:$0xff]
        %v584 = vld [vmem:[#allocation13 + $0x20] sm:$0xff]
        %v585 = vld [vmem:[#allocation13 + $0x28] sm:$0xff]
        %v586 = vld [vmem:[#allocation13 + $0x30] sm:$0xff]
        %v587 = vld [vmem:[#allocation13 + $0x38] sm:$0xff]
        %v588 = vld [vmem:[#allocation13 + $0x40] sm:$0xff]
        %v589 = vld [vmem:[#allocation13 + $0x48] sm:$0xff]
        %v590 = vld [vmem:[#allocation13 + $0x50] sm:$0xff]
        %v591 = vld [vmem:[#allocation13 + $0x58] sm:$0xff]
        %v592 = vld [vmem:[#allocation13 + $0x60] sm:$0xff]
        %v593 = vld [vmem:[#allocation13 + $0x68] sm:$0xff]
        %v594 = vld [vmem:[#allocation13 + $0x70] sm:$0xff]
        %v595 = vld [vmem:[#allocation13 + $0x78] sm:$0xff]
        %v596 = vld [vmem:[#allocation2] sm:$0x1]
        %v598 = vlaneseq
        %v599 = vshrl.u32 %v598, 7
        %v600 = vsub.s32 0, %v599
        %v601 = vrot.slane %v596, %v600
        %603 = vmatprep.subr.mxu0 0.0
        %604 = vmatpush1.msra.mxu0 %v580
        %605 = vmatprep.subr.mxu0 0.0
        %606 = vmatpush1.msra.mxu0 %v581
        %607 = vmatprep.subr.mxu0 0.0
        %608 = vmatpush1.msra.mxu0 %v582
        %609 = vmatprep.subr.mxu0 0.0
        %610 = vmatpush1.msra.mxu0 %v583
        %611 = vmatprep.subr.mxu0 0.0
        %612 = vmatpush1.msra.mxu0 %v584
        %613 = vmatprep.subr.mxu0 0.0
        %614 = vmatpush1.msra.mxu0 %v585
        %615 = vmatprep.subr.mxu0 0.0
        %616 = vmatpush1.msra.mxu0 %v586
        %617 = vmatprep.subr.mxu0 0.0
        %618 = vmatpush1.msra.mxu0 %v587
        %619 = vmatprep.subr.mxu0 0.0
        %620 = vmatpush1.msra.mxu0 %v588
        %621 = vmatprep.subr.mxu0 0.0
        %622 = vmatpush1.msra.mxu0 %v589
        %623 = vmatprep.subr.mxu0 0.0
        %624 = vmatpush1.msra.mxu0 %v590
        %625 = vmatprep.subr.mxu0 0.0
        %626 = vmatpush1.msra.mxu0 %v591
        %627 = vmatprep.subr.mxu0 0.0
        %628 = vmatpush1.msra.mxu0 %v592
        %629 = vmatprep.subr.mxu0 0.0
        %630 = vmatpush1.msra.mxu0 %v593
        %631 = vmatprep.subr.mxu0 0.0
        %632 = vmatpush1.msra.mxu0 %v594
        %633 = vmatprep.subr.mxu0 0.0
        %634 = vmatpush1.msra.mxu0 %v595
        %635 = vmatprep.subr.mxu0 0.0
        %636 = vmatpush1.msra.mxu0 0.0
        %637 = vmatprep.subr.mxu0 0.0
        %638 = vmatpush1.msra.mxu0 0.0
        %639 = vmatprep.subr.mxu0 0.0
        %640 = vmatpush1.msra.mxu0 0.0
        %641 = vmatprep.subr.mxu0 0.0
        %642 = vmatpush1.msra.mxu0 0.0
        %643 = vmatprep.subr.mxu0 0.0
        %644 = vmatpush1.msra.mxu0 0.0
        %645 = vmatprep.subr.mxu0 0.0
        %646 = vmatpush1.msra.mxu0 0.0
        %647 = vmatprep.subr.mxu0 0.0
        %648 = vmatpush1.msra.mxu0 0.0
        %649 = vmatprep.subr.mxu0 0.0
        %650 = vmatpush1.msra.mxu0 0.0
        %651 = vmatprep.subr.mxu0 0.0
        %652 = vmatpush1.msra.mxu0 0.0
        %653 = vmatprep.subr.mxu0 0.0
        %654 = vmatpush1.msra.mxu0 0.0
        %655 = vmatprep.subr.mxu0 0.0
        %656 = vmatpush1.msra.mxu0 0.0
        %657 = vmatprep.subr.mxu0 0.0
        %658 = vmatpush1.msra.mxu0 0.0
        %659 = vmatprep.subr.mxu0 0.0
        %660 = vmatpush1.msra.mxu0 0.0
        %661 = vmatprep.subr.mxu0 0.0
        %662 = vmatpush1.msra.mxu0 0.0
        %663 = vmatprep.subr.mxu0 0.0
        %664 = vmatpush1.msra.mxu0 0.0
        %665 = vmatprep.subr.mxu0 0.0
        %666 = vmatpush1.msra.mxu0 0.0
        %667 = vmatprep.mubr.f32.mxu0 0.0
        %668 = vmatmul.mubr.f32.gmra.mrb[0].mxu0 %v564
        %v669 = vpop.f32.mrb[0].mxu0
        %v670 = vadd.f32 %v601, %v669
        %v671 = vpop.f32.mrb[0].mxu0
        %672 = vmatprep.mubr.f32.mxu0 0.0
        %673 = vmatmul.mubr.f32.gmra.mrb[0].mxu0 %v565
        %v674 = vpop.f32.mrb[0].mxu0
        %v675 = vadd.f32 %v601, %v674
        %v676 = vpop.f32.mrb[0].mxu0
        %677 = vmatprep.mubr.f32.mxu0 0.0
        %678 = vmatmul.mubr.f32.gmra.mrb[0].mxu0 %v566
        %v679 = vpop.f32.mrb[0].mxu0
        %v680 = vadd.f32 %v601, %v679
        %v681 = vpop.f32.mrb[0].mxu0
        %682 = vmatprep.mubr.f32.mxu0 0.0
        %683 = vmatmul.mubr.f32.gmra.mrb[0].mxu0 %v567
        %v684 = vpop.f32.mrb[0].mxu0
        %v685 = vadd.f32 %v601, %v684
        %v686 = vpop.f32.mrb[0].mxu0
        %687 = vmatprep.mubr.f32.mxu0 0.0
        %688 = vmatmul.mubr.f32.gmra.mrb[0].mxu0 %v568
        %v689 = vpop.f32.mrb[0].mxu0
        %v690 = vadd.f32 %v601, %v689
        %v691 = vpop.f32.mrb[0].mxu0
        %692 = vmatprep.mubr.f32.mxu0 0.0
        %693 = vmatmul.mubr.f32.gmra.mrb[0].mxu0 %v569
        %v694 = vpop.f32.mrb[0].mxu0
        %v695 = vadd.f32 %v601, %v694
        %v696 = vpop.f32.mrb[0].mxu0
        %697 = vmatprep.mubr.f32.mxu0 0.0
        %698 = vmatmul.mubr.f32.gmra.mrb[0].mxu0 %v570
        %v699 = vpop.f32.mrb[0].mxu0
        %v700 = vadd.f32 %v601, %v699
        %v701 = vpop.f32.mrb[0].mxu0
        %702 = vmatprep.mubr.f32.mxu0 0.0
        %703 = vmatmul.mubr.f32.gmra.mrb[0].mxu0 %v571
        %v704 = vpop.f32.mrb[0].mxu0
        %v705 = vadd.f32 %v601, %v704
        %v706 = vpop.f32.mrb[0].mxu0
        %707 = vmatprep.mubr.f32.mxu0 0.0
        %708 = vmatmul.mubr.f32.gmra.mrb[0].mxu0 %v572
        %v709 = vpop.f32.mrb[0].mxu0
        %v710 = vadd.f32 %v601, %v709
        %v711 = vpop.f32.mrb[0].mxu0
        %712 = vmatprep.mubr.f32.mxu0 0.0
        %713 = vmatmul.mubr.f32.gmra.mrb[0].mxu0 %v573
        %v714 = vpop.f32.mrb[0].mxu0
        %v715 = vadd.f32 %v601, %v714
        %v716 = vpop.f32.mrb[0].mxu0
        %717 = vmatprep.mubr.f32.mxu0 0.0
        %718 = vmatmul.mubr.f32.gmra.mrb[0].mxu0 %v574
        %v719 = vpop.f32.mrb[0].mxu0
        %v720 = vadd.f32 %v601, %v719
        %v721 = vpop.f32.mrb[0].mxu0
        %722 = vmatprep.mubr.f32.mxu0 0.0
        %723 = vmatmul.mubr.f32.gmra.mrb[0].mxu0 %v575
        %v724 = vpop.f32.mrb[0].mxu0
        %v725 = vadd.f32 %v601, %v724
        %v726 = vpop.f32.mrb[0].mxu0
        %727 = vmatprep.mubr.f32.mxu0 0.0
        %728 = vmatmul.mubr.f32.gmra.mrb[0].mxu0 %v576
        %v729 = vpop.f32.mrb[0].mxu0
        %v730 = vadd.f32 %v601, %v729
        %v731 = vpop.f32.mrb[0].mxu0
        %732 = vmatprep.mubr.f32.mxu0 0.0
        %733 = vmatmul.mubr.f32.gmra.mrb[0].mxu0 %v577
        %v734 = vpop.f32.mrb[0].mxu0
        %v735 = vadd.f32 %v601, %v734
        %v736 = vpop.f32.mrb[0].mxu0
        %737 = vmatprep.mubr.f32.mxu0 0.0
        %738 = vmatmul.mubr.f32.gmra.mrb[0].mxu0 %v578
        %v739 = vpop.f32.mrb[0].mxu0
        %v740 = vadd.f32 %v601, %v739
        %v741 = vpop.f32.mrb[0].mxu0
        %742 = vmatprep.mubr.f32.mxu0 0.0
        %743 = vmatmul.mubr.f32.gmra.mrb[0].mxu0 %v579
        %v744 = vpop.f32.mrb[0].mxu0
        %v745 = vadd.f32 %v601, %v744
        %v746 = vpop.f32.mrb[0].mxu0
        %747 = vdwg.mxu0
        %v748 = vld [vmem:[%s5] sm:$0x1]
        %v750 = vlaneseq
        %v751 = vshrl.u32 %v750, 7
        %v752 = vsub.s32 0, %v751
        %v753 = vrot.slane %v748, %v752
        %v755 = vadd.f32 %v670, %v753
        %v756 = vadd.f32 %v675, %v753
        %v757 = vadd.f32 %v680, %v753
        %v758 = vadd.f32 %v685, %v753
        %v759 = vadd.f32 %v690, %v753
        %v760 = vadd.f32 %v695, %v753
        %v761 = vadd.f32 %v700, %v753
        %v762 = vadd.f32 %v705, %v753
        %v763 = vadd.f32 %v710, %v753
        %v764 = vadd.f32 %v715, %v753
        %v765 = vadd.f32 %v720, %v753
        %v766 = vadd.f32 %v725, %v753
        %v767 = vadd.f32 %v730, %v753
        %v768 = vadd.f32 %v735, %v753
        %v769 = vadd.f32 %v740, %v753
        %v770 = vadd.f32 %v745, %v753
        %v771 = vtanh.pop %v755
        %v772 = vtanh.pop %v756
        %v773 = vtanh.pop %v757
        %v774 = vtanh.pop %v758
        %v775 = vtanh.pop %v759
        %v776 = vtanh.pop %v760
        %v777 = vtanh.pop %v761
        %v778 = vtanh.pop %v762
        %v779 = vtanh.pop %v763
        %v780 = vtanh.pop %v764
        %v781 = vtanh.pop %v765
        %v782 = vtanh.pop %v766
        %v783 = vtanh.pop %v767
        %v784 = vtanh.pop %v768
        %v785 = vtanh.pop %v769
        %v786 = vtanh.pop %v770
        %v787 = vld [vmem:[%s6] sm:$0x1]
        %v788 = vld [vmem:[#allocation6] sm:$0x1]
        %790 = vset.pattern.permute.xlu0 0
        %791 = vperm.xlu0 %790, %v788
        %v792 = vpop.permute.xlu0 %791
        %v794 = vlaneseq
        %v795 = vshrl.u32 %v794, 7
        %v796 = vsub.s32 0, %v795
        %v797 = vrot.slane %v792, %v796
        %798 = vmatprep.subr.mxu0 0.0
        %799 = vmatpush1.xpose.msra.mxu0 %v771
        %800 = vmatprep.subr.mxu0 0.0
        %801 = vmatpush1.xpose.msra.mxu0 %v772
        %802 = vmatprep.subr.mxu0 0.0
        %803 = vmatpush1.xpose.msra.mxu0 %v773
        %804 = vmatprep.subr.mxu0 0.0
        %805 = vmatpush1.xpose.msra.mxu0 %v774
        %806 = vmatprep.subr.mxu0 0.0
        %807 = vmatpush1.xpose.msra.mxu0 %v775
        %808 = vmatprep.subr.mxu0 0.0
        %809 = vmatpush1.xpose.msra.mxu0 %v776
        %810 = vmatprep.subr.mxu0 0.0
        %811 = vmatpush1.xpose.msra.mxu0 %v777
        %812 = vmatprep.subr.mxu0 0.0
        %813 = vmatpush1.xpose.msra.mxu0 %v778
        %814 = vmatprep.subr.mxu0 0.0
        %815 = vmatpush1.xpose.msra.mxu0 %v779
        %816 = vmatprep.subr.mxu0 0.0
        %817 = vmatpush1.xpose.msra.mxu0 %v780
        %818 = vmatprep.subr.mxu0 0.0
        %819 = vmatpush1.xpose.msra.mxu0 %v781
        %820 = vmatprep.subr.mxu0 0.0
        %821 = vmatpush1.xpose.msra.mxu0 %v782
        %822 = vmatprep.subr.mxu0 0.0
        %823 = vmatpush1.xpose.msra.mxu0 %v783
        %824 = vmatprep.subr.mxu0 0.0
        %825 = vmatpush1.xpose.msra.mxu0 %v784
        %826 = vmatprep.subr.mxu0 0.0
        %827 = vmatpush1.xpose.msra.mxu0 %v785
        %828 = vmatprep.subr.mxu0 0.0
        %829 = vmatpush1.xpose.msra.mxu0 %v786
        %830 = vmatprep.subr.mxu0 0.0
        %831 = vmatpush1.xpose.msra.mxu0 0.0
        %832 = vmatprep.subr.mxu0 0.0
        %833 = vmatpush1.xpose.msra.mxu0 0.0
        %834 = vmatprep.subr.mxu0 0.0
        %835 = vmatpush1.xpose.msra.mxu0 0.0
        %836 = vmatprep.subr.mxu0 0.0
        %837 = vmatpush1.xpose.msra.mxu0 0.0
        %838 = vmatprep.subr.mxu0 0.0
        %839 = vmatpush1.xpose.msra.mxu0 0.0
        %840 = vmatprep.subr.mxu0 0.0
        %841 = vmatpush1.xpose.msra.mxu0 0.0
        %842 = vmatprep.subr.mxu0 0.0
        %843 = vmatpush1.xpose.msra.mxu0 0.0
        %844 = vmatprep.subr.mxu0 0.0
        %845 = vmatpush1.xpose.msra.mxu0 0.0
        %846 = vmatprep.subr.mxu0 0.0
        %847 = vmatpush1.xpose.msra.mxu0 0.0
        %848 = vmatprep.subr.mxu0 0.0
        %849 = vmatpush1.xpose.msra.mxu0 0.0
        %850 = vmatprep.subr.mxu0 0.0
        %851 = vmatpush1.xpose.msra.mxu0 0.0
        %852 = vmatprep.subr.mxu0 0.0
        %853 = vmatpush1.xpose.msra.mxu0 0.0
        %854 = vmatprep.subr.mxu0 0.0
        %855 = vmatpush1.xpose.msra.mxu0 0.0
        %856 = vmatprep.subr.mxu0 0.0
        %857 = vmatpush1.xpose.msra.mxu0 0.0
        %858 = vmatprep.subr.mxu0 0.0
        %859 = vmatpush1.xpose.msra.mxu0 0.0
        %860 = vmatprep.subr.mxu0 0.0
        %861 = vmatpush1.xpose.msra.mxu0 0.0
        %862 = vmatprep.mubr.f32.mxu0 0.0
        %863 = vmatmul.mubr.f32.gmra.mrb[0].mxu0 %v787
        %v864 = vpop.f32.mrb[0].mxu0
        %v865 = vadd.f32 %v797, %v864
        %v866 = vpop.f32.mrb[0].mxu0
        %867 = vdwg.mxu0
        %s868 = scalar_lea.vmem %s462, %s41 [#allocation16]
        %869 = vst [vmem:[%s868] sm:$0x1] %v865
        %v870 = vld [vmem:[#allocation3] sm:$0x1]
        %vm871 = vcmask 1040384
        %v872 = vsel %vm871, %v865, -inf
        %873 = vmax.xlane.f32.xlu0 %v872
        %v874 = vpop.xlane.xlu0 %873
        %v875 = vmax.f32 %v870, %v874
        %v876 = vsub.f32 %v870, %v875
        %v877 = vmul.f32 %v876, 1.442695
        %v878 = vpow.pop %v877
        %880 = vset.pattern.permute.xlu0 0
        %881 = vperm.xlu0 %880, %v875
        %v882 = vpop.permute.xlu0 %881
        %v884 = vlaneseq
        %v885 = vshrl.u32 %v884, 7
        %v886 = vsub.s32 0, %v885
        %v887 = vrot.slane %v882, %v886
        %v888 = vsub.f32 %v865, %v887
        %v889 = vmul.f32 %v888, 1.442695
        %v890 = vpow.pop %v889
        %v891 = vld [vmem:[#allocation4] sm:$0x1]
        %v892 = vmul.f32 %v878, %v891
        %v893 = vsel %vm871, %v890, 0.0
        %894 = vadd.xlane.f32.xlu0 %v893
        %v895 = vpop.xlane.xlu0 %894
        %v896 = vadd.f32 %v892, %v895
        %vm897 = vcmask 0
        %898 = vst.msk [vmem:[#allocation4] sm:$0x1] %vm897, %v896
        %v899 = vld [vmem:[#allocation5] sm:$0x1]
        %901 = vset.pattern.permute.xlu0 0
        %902 = vperm.xlu0 %901, %v878
        %v903 = vpop.permute.xlu0 %902
        %v905 = vlaneseq
        %v906 = vshrl.u32 %v905, 7
        %v907 = vsub.s32 0, %v906
        %v908 = vrot.slane %v903, %v907
        %v909 = vmul.f32 %v908, %v899
        %v910 = vld [vmem:[%s408] sm:$0xff]
        %v911 = vld [vmem:[%s408 + $0x8] sm:$0xff]
        %v912 = vld [vmem:[%s408 + $0x10] sm:$0xff]
        %v913 = vld [vmem:[%s408 + $0x18] sm:$0xff]
        %v914 = vld [vmem:[%s408 + $0x20] sm:$0xff]
        %v915 = vld [vmem:[%s408 + $0x28] sm:$0xff]
        %v916 = vld [vmem:[%s408 + $0x30] sm:$0xff]
        %v917 = vld [vmem:[%s408 + $0x38] sm:$0xff]
        %v918 = vld [vmem:[%s408 + $0x40] sm:$0xff]
        %v919 = vld [vmem:[%s408 + $0x48] sm:$0xff]
        %v920 = vld [vmem:[%s408 + $0x50] sm:$0xff]
        %v921 = vld [vmem:[%s408 + $0x58] sm:$0xff]
        %v922 = vld [vmem:[%s408 + $0x60] sm:$0xff]
        %v923 = vld [vmem:[%s408 + $0x68] sm:$0xff]
        %v924 = vld [vmem:[%s408 + $0x70] sm:$0xff]
        %v925 = vld [vmem:[%s408 + $0x78] sm:$0xff]
        %926 = vmatprep.subr.mxu0 0.0
        %927 = vmatpush1.msra.mxu0 %v910
        %928 = vmatprep.subr.mxu0 0.0
        %929 = vmatpush1.msra.mxu0 %v911
        %930 = vmatprep.subr.mxu0 0.0
        %931 = vmatpush1.msra.mxu0 %v912
        %932 = vmatprep.subr.mxu0 0.0
        %933 = vmatpush1.msra.mxu0 %v913
        %934 = vmatprep.subr.mxu0 0.0
        %935 = vmatpush1.msra.mxu0 %v914
        %936 = vmatprep.subr.mxu0 0.0
        %937 = vmatpush1.msra.mxu0 %v915
        %938 = vmatprep.subr.mxu0 0.0
        %939 = vmatpush1.msra.mxu0 %v916
        %940 = vmatprep.subr.mxu0 0.0
        %941 = vmatpush1.msra.mxu0 %v917
        %942 = vmatprep.subr.mxu0 0.0
        %943 = vmatpush1.msra.mxu0 %v918
        %944 = vmatprep.subr.mxu0 0.0
        %945 = vmatpush1.msra.mxu0 %v919
        %946 = vmatprep.subr.mxu0 0.0
        %947 = vmatpush1.msra.mxu0 %v920
        %948 = vmatprep.subr.mxu0 0.0
        %949 = vmatpush1.msra.mxu0 %v921
        %950 = vmatprep.subr.mxu0 0.0
        %951 = vmatpush1.msra.mxu0 %v922
        %952 = vmatprep.subr.mxu0 0.0
        %953 = vmatpush1.msra.mxu0 %v923
        %954 = vmatprep.subr.mxu0 0.0
        %955 = vmatpush1.msra.mxu0 %v924
        %956 = vmatprep.subr.mxu0 0.0
        %957 = vmatpush1.msra.mxu0 %v925
        %958 = vmatprep.subr.mxu0 0.0
        %959 = vmatpush1.msra.mxu0 0.0
        %960 = vmatprep.subr.mxu0 0.0
        %961 = vmatpush1.msra.mxu0 0.0
        %962 = vmatprep.subr.mxu0 0.0
        %963 = vmatpush1.msra.mxu0 0.0
        %964 = vmatprep.subr.mxu0 0.0
        %965 = vmatpush1.msra.mxu0 0.0
        %966 = vmatprep.subr.mxu0 0.0
        %967 = vmatpush1.msra.mxu0 0.0
        %968 = vmatprep.subr.mxu0 0.0
        %969 = vmatpush1.msra.mxu0 0.0
        %970 = vmatprep.subr.mxu0 0.0
        %971 = vmatpush1.msra.mxu0 0.0
        %972 = vmatprep.subr.mxu0 0.0
        %973 = vmatpush1.msra.mxu0 0.0
        %974 = vmatprep.subr.mxu0 0.0
        %975 = vmatpush1.msra.mxu0 0.0
        %976 = vmatprep.subr.mxu0 0.0
        %977 = vmatpush1.msra.mxu0 0.0
        %978 = vmatprep.subr.mxu0 0.0
        %979 = vmatpush1.msra.mxu0 0.0
        %980 = vmatprep.subr.mxu0 0.0
        %981 = vmatpush1.msra.mxu0 0.0
        %982 = vmatprep.subr.mxu0 0.0
        %983 = vmatpush1.msra.mxu0 0.0
        %984 = vmatprep.subr.mxu0 0.0
        %985 = vmatpush1.msra.mxu0 0.0
        %986 = vmatprep.subr.mxu0 0.0
        %987 = vmatpush1.msra.mxu0 0.0
        %988 = vmatprep.subr.mxu0 0.0
        %989 = vmatpush1.msra.mxu0 0.0
        %990 = vmatprep.mubr.f32.mxu0 0.0
        %991 = vmatmul.mubr.f32.gmra.mrb[0].mxu0 %v890
        %v992 = vpop.f32.mrb[0].mxu0
        %v993 = vadd.f32 0.0, %v992
        %v994 = vpop.f32.mrb[0].mxu0
        %995 = vdwg.mxu0
        %v996 = vadd.f32 %v909, %v993
        %997 = vst [vmem:[#allocation5] sm:$0x1] %v996
        %998 = vst.msk [vmem:[#allocation3] sm:$0x1] %vm897, %v875
        %p999 = scmp.eq.s32.totalorder %s41, 1
        // Predicated region
        $region73: #{tpu_custom_call.1} parent=51 // pred_check
          %p1000 = pneg %p999
        $region74: #{tpu_custom_call.1} parent=51 // pred_check_branch
          %1002 = sbr.rel (%p1000) target = $region76
        $region75: #{tpu_custom_call.1} parent=51 // pred_region
          %v1003 = vld [vmem:[#allocation4] sm:$0x1]
          %v1004 = vrcp.pop %v1003
          %v1005 = vld [vmem:[#allocation5] sm:$0x1]
          %1007 = vset.pattern.permute.xlu0 0
          %1008 = vperm.xlu0 %1007, %v1004
          %v1009 = vpop.permute.xlu0 %1008
          %v1011 = vlaneseq
          %v1012 = vshrl.u32 %v1011, 7
          %v1013 = vsub.s32 0, %v1012
          %v1014 = vrot.slane %v1009, %v1013
          %v1015 = vmul.f32 %v1005, %v1014
          %1016 = vst [vmem:[%s455] sm:$0x1] %v1015
          %v1017 = vld [vmem:[#allocation3] sm:$0x1]
          %v1018 = vld [vmem:[%s462] sm:$0x1]
          %v1019 = vld [vmem:[%s462 + $0x1] sm:$0x1]
          %1021 = vset.pattern.permute.xlu0 0
          %1022 = vperm.xlu0 %1021, %v1017
          %v1023 = vpop.permute.xlu0 %1022
          %v1025 = vlaneseq
          %v1026 = vshrl.u32 %v1025, 7
          %v1027 = vsub.s32 0, %v1026
          %v1028 = vrot.slane %v1023, %v1027
          %v1029 = vsub.f32 %v1018, %v1028
          %v1030 = vsub.f32 %v1019, %v1028
          %v1031 = vmul.f32 %v1029, 1.442695
          %v1032 = vpow.pop %v1031
          %v1033 = vmul.f32 %v1030, 1.442695
          %v1034 = vpow.pop %v1033
          %v1035 = vmul.f32 %v1032, %v1014
          %v1036 = vmul.f32 %v1034, %v1014
          %1037 = vst [vmem:[%s462] sm:$0x1] %v1035
          %1038 = vst [vmem:[%s462 + $0x1] sm:$0x1] %v1036
        $region76: #{tpu_custom_call.1} parent=51 // pred_fallthru
          _
        %s1039 = sand.u32 %s243, 1
        %s1040 = scalar_lea.sflag [#allocation9], %s1039
        %s1041 = sand.u32 %s243, 1
        %s1042 = scalar_lea.vmem [#allocation15], %s1041
        %s1043 = sand.u32 %s269, 1
        %s1044 = scalar_lea.sflag [#allocation17], %s1043
        %s1045 = sand.u32 %s269, 1
        %s1046 = smul.addr %s1045, 2
        %s1047 = scalar_lea.vmem [#allocation16], %s1046
        // Predicated region
        $region77: #{tpu_custom_call.1} parent=51 // pred_check
          %p1048 = pneg %p253
        $region78: #{tpu_custom_call.1} parent=51 // pred_check_branch
          %1050 = sbr.rel (%p1048) target = $region80
        $region79: #{tpu_custom_call.1} parent=51 // pred_region
          %s1052 = ssub.s32 16, 16
          %1053 = vsyncadd %s1040, %s1052
          %s1054 = smul.addr %s40, 16
          %s1055 = scalar_lea.hbm %s8, %s1054
          %s1057 = sshll.u32 %s1042, 4
          %s1058 = int_to_ptr.vmem [resolvable:$true] %s1057
          %1060 = dma.vmem_to_hbm [thread:$0]  %s1058, 16, %s1055, %s1040
        $region80: #{tpu_custom_call.1} parent=51 // pred_fallthru
          _
        // Predicated region
        $region81: #{tpu_custom_call.1} parent=51 // pred_check
          %p1061 = pneg %p279
        $region82: #{tpu_custom_call.1} parent=51 // pred_check_branch
          %1063 = sbr.rel (%p1061) target = $region84
        $region83: #{tpu_custom_call.1} parent=51 // pred_region
          %s1065 = ssub.s32 32, 32
          %1066 = vsyncadd %s1044, %s1065
          %s1067 = smul.addr %s40, 2
          %s1068 = smul.addr %s1067, 16
          %s1069 = scalar_lea.hbm %s9, %s1068
          %s1070 = sshll.u32 %s1047, 4
          %s1071 = int_to_ptr.vmem [resolvable:$true] %s1070
          %1076 = dma.vmem_to_hbm [thread:$0]  %s1071, 32, %s1069, %s1044, 16, 16, 1
        $region84: #{tpu_custom_call.1} parent=51 // pred_fallthru
          _
      $region52: #{tpu_custom_call.1} parent=5 // pred_fallthru
        _
      %p1077 = scmp.le.s32.totalorder 2, %s31
      // Predicated region
      $region85: #{tpu_custom_call.1} parent=5 // pred_check
        %p1078 = pneg %p1077
      $region86: #{tpu_custom_call.1} parent=5 // pred_check_branch
        %1080 = sbr.rel (%p1078) target = $region88
      $region87: #{tpu_custom_call.1} parent=5 // pred_region
        %s1081 = ssub.s32 %s31, 2
        // Predicated region
        $region89: #{tpu_custom_call.1} parent=87 // pred_check
          %p1082 = pneg %p259
        $region90: #{tpu_custom_call.1} parent=87 // pred_check_branch
          %1084 = sbr.rel (%p1082) target = $region92
        $region91: #{tpu_custom_call.1} parent=87 // pred_region
          %s1085 = sand.u32 %s244, 1
          %s1086 = scalar_lea.sflag [#allocation9], %s1085
          %s1087 = sand.u32 %s244, 1
          %s1088 = scalar_lea.vmem [#allocation15], %s1087
          %1089 = dma.done %s1086, 16
        $region92: #{tpu_custom_call.1} parent=87 // pred_fallthru
          _
        // Predicated region
        $region93: #{tpu_custom_call.1} parent=87 // pred_check
          %p1090 = pneg %p285
        $region94: #{tpu_custom_call.1} parent=87 // pred_check_branch
          %1092 = sbr.rel (%p1090) target = $region96
        $region95: #{tpu_custom_call.1} parent=87 // pred_region
          %s1093 = sand.u32 %s270, 1
          %s1094 = scalar_lea.sflag [#allocation17], %s1093
          %s1095 = sand.u32 %s270, 1
          %s1096 = smul.addr %s1095, 2
          %s1097 = scalar_lea.vmem [#allocation16], %s1096
          %1098 = dma.done %s1094, 32
        $region96: #{tpu_custom_call.1} parent=87 // pred_fallthru
          _
      $region88: #{tpu_custom_call.1} parent=5 // pred_fallthru
        _
    $region6: #{tpu_custom_call.1} parent=1 // loop_footer
      %s35 = sadd.s32 1, %s31
    $region7: #{tpu_custom_call.1} parent=1 // loop_footer_branch
      %30 = sbr.rel target = $region3
    $region8: #{tpu_custom_call.1} parent=1 // loop_exit
      _
    %1099 = vsyncpa [#allocation8], 1
    %s1100 = scalar_lea.sflag [#allocation8], 1
    %1101 = vsyncpa %s1100, 1
    %1102 = vsyncpa [#allocation11], 1
    %s1103 = scalar_lea.sflag [#allocation11], 1
    %1104 = vsyncpa %s1103, 1
    %1105 = vsyncpa [#allocation14], 1
    %1106 = vsyncpa [#allocation9], 1
    %s1107 = scalar_lea.sflag [#allocation9], 1
    %1108 = vsyncpa %s1107, 1
    %1109 = vsyncpa [#allocation17], 1
    %s1110 = scalar_lea.sflag [#allocation17], 1
    %1111 = vsyncpa %s1110, 1

</llo_original>
